<compile_context>
chip_gen: v5e
topology: v5e:2x2
jax: 0.10.0
libtpu: 0.0.40
codegen_flags: <defaults>
</compile_context>

<pallas_src>
import math
import functools

import jax
import jax.numpy as jnp
from jax.experimental import pallas as pl
from jax.experimental.pallas import tpu as pltpu


# ---------------------------------------------------------------------------
# Kernels
# ---------------------------------------------------------------------------
def _pe_kernel(x_ref, pe_ref, o_ref):
    # x_ref : (TILE_S, B, D) VMEM;  pe_ref: (TILE_S, D) VMEM
    o_ref[...] = x_ref[...] + pe_ref[...][:, None, :]


def _pe_dropout_kernel(x_ref, pe_ref, bits_ref, o_ref, *, threshold, inv_keep):
    # Inverted dropout: keep with prob (1 - p), scale kept values by 1/(1-p).
    # Mask derived from raw uint32 bits vs. an integer threshold (no f32 math).
    y = x_ref[...] + pe_ref[...][:, None, :]
    keep = bits_ref[...] >= jnp.uint32(threshold)
    o_ref[...] = jnp.where(keep,
                           y * jnp.asarray(inv_keep, dtype=y.dtype),
                           jnp.zeros_like(y))


# ---------------------------------------------------------------------------
# PE table construction (mirrors PositionalEncoding.__init__, plain JAX glue)
# ---------------------------------------------------------------------------
def make_pe_table(d_model: int, max_len: int = 5000) -> jnp.ndarray:
    """Equivalent to the module's buffer self.pe[:, 0, :] -> shape (max_len, d_model)."""
    position = jnp.arange(max_len, dtype=jnp.float32)[:, None]                 # (L, 1)
    div_term = jnp.exp(jnp.arange(0, d_model, 2, dtype=jnp.float32)
                       * (-math.log(10000.0) / d_model))                        # (D/2,)
    pe = jnp.zeros((max_len, d_model), dtype=jnp.float32)
    pe = pe.at[:, 0::2].set(jnp.sin(position * div_term))
    pe = pe.at[:, 1::2].set(jnp.cos(position * div_term))
    return pe


# ---------------------------------------------------------------------------
# Wrapper
# ---------------------------------------------------------------------------
def _choose_tile_s(S: int, B: int, D: int, itemsize: int,
                   target_bytes: int = 2 << 20) -> int:
    """Pick a seq tile so one x tile is ~2 MiB and a multiple of 8 rows."""
    bytes_per_row = max(1, B * D * itemsize)
    rows = max(8, (target_bytes // bytes_per_row) // 8 * 8)
    return min(rows, S)


def positional_encoding(x: jnp.ndarray,
                        pe_table: jnp.ndarray,
                        *,
                        p: float = 0.1,
                        training: bool = False,
                        key=None) -> jnp.ndarray:
    """x: [seq_len, batch, d_model]; pe_table: [max_len, d_model]."""
    S, B, D = x.shape
    max_len = pe_table.shape[0]
    assert S <= max_len, "seq_len exceeds positional-encoding table length"

    pe = pe_table if pe_table.dtype == x.dtype else pe_table.astype(x.dtype)
    itemsize = jnp.dtype(x.dtype).itemsize

    if S >= 8:
        tile_s = _choose_tile_s(S, B, D, itemsize)
        grid = (pl.cdiv(S, tile_s),)
        x_spec = pl.BlockSpec((tile_s, B, D), lambda i: (i, 0, 0))
        pe_spec = pl.BlockSpec((tile_s, D), lambda i: (i, 0))
        pe_arg = pe                      # index straight into the full table
    else:
        # Tiny sequences: one block whose dims equal the full array dims.
        tile_s = S
        grid = (1,)
        x_spec = pl.BlockSpec((S, B, D), lambda i: (0, 0, 0))
        pe_spec = pl.BlockSpec((S, D), lambda i: (0, 0))
        pe_arg = pe[:S]

    out_spec = pl.BlockSpec((tile_s, B, D), lambda i: (i, 0, 0))
    out_shape = jax.ShapeDtypeStruct((S, B, D), x.dtype)
    cparams = pltpu.CompilerParams(dimension_semantics=("parallel",))

    apply_dropout = training and p > 0.0
    if not apply_dropout:
        return pl.pallas_call(
            _pe_kernel,
            out_shape=out_shape,
            grid_spec=pltpu.PrefetchScalarGridSpec(
                num_scalar_prefetch=0,
                grid=grid,
                in_specs=[x_spec, pe_spec],
                out_specs=out_spec),
            compiler_params=cparams,
        )(x, pe_arg)

    if key is None:
        key = jax.random.PRNGKey(0)
    # TODO(synk): random bits are drawn host-side (works on TPU and in interpret
    # mode); switching to per-tile pltpu.prng_seed(seed + program_id) on real TPU
    # would save the extra uint32 stream if profiling shows the mask DMA matters.
    bits = jax.random.bits(key, (S, B, D), dtype=jnp.uint32)
    bits_spec = pl.BlockSpec((tile_s, B, D), lambda i: (i, 0, 0))

    threshold = min(int(round(p * float(1 << 32))), (1 << 32) - 1)
    inv_keep = 1.0 / (1.0 - p)
    kernel = functools.partial(_pe_dropout_kernel,
                               threshold=threshold, inv_keep=inv_keep)

    return pl.pallas_call(
        kernel,
        out_shape=out_shape,
        grid_spec=pltpu.PrefetchScalarGridSpec(
            num_scalar_prefetch=0,
            grid=grid,
            in_specs=[x_spec, pe_spec, bits_spec],
            out_specs=out_spec),
        compiler_params=cparams,
    )(x, pe_arg, bits)


# ---------------------------------------------------------------------------
# Self-test
# ---------------------------------------------------------------------------
if __name__ == "__main__":
    # Shapes consistent with the module's forward: [seq_len, batch, d_model]
    S, B, D = 8, 2, 32
    key = jax.random.PRNGKey(0)
    kx, kd = jax.random.split(key)
    x = jax.random.normal(kx, (S, B, D), dtype=jnp.float32)

    pe_table = make_pe_table(D, max_len=5000)
    ref = x + pe_table[:S][:, None, :]

    # Eval-mode forward (dropout is identity) — deterministic check.
    out = jax.block_until_ready(
        positional_encoding(x, pe_table, p=0.1, training=False))
    assert out.shape == (S, B, D)
    assert jnp.allclose(out, ref, atol=1e-6), "eval-mode mismatch vs reference"

    # Training-mode dropout path: kept elements must equal ref * 1/(1-p),
    # dropped elements are exactly zero.
    p = 0.1
    out_tr = jax.block_until_ready(
        positional_encoding(x, pe_table, p=p, training=True, key=kd))
    assert out_tr.shape == (S, B, D)
    kept = out_tr != 0
    expected = jnp.where(kept, ref * jnp.float32(1.0 / (1.0 - p)), 0.0)
    assert jnp.allclose(out_tr, expected, atol=1e-5), "train-mode dropout mismatch"
    drop_frac = 1.0 - float(jnp.mean(kept.astype(jnp.float32)))
    assert 0.0 <= drop_frac <= 0.5, f"implausible drop fraction {drop_frac}"

    print("KERNEL_OK")
</pallas_src>

<mosaic_0001>
module attributes {stable_mosaic.version = 11 : i64} {
  func.func @_pe_kernel(%arg0: i32, %arg1: memref<8x2x32xf32, #tpu.memory_space<vmem>>, %arg2: memref<8x32xf32, #tpu.memory_space<vmem>>, %arg3: memref<8x2x32xf32, #tpu.memory_space<vmem>>) attributes {dimension_semantics = [#tpu.dimension_semantics<parallel>], iteration_bounds = array<i64: 1>, scalar_prefetch = 0 : i64, scratch_operands = 0 : i64, tpu.core_type = #tpu.core_type<tc>, window_params = [{transform_indices = @transform_0, window_bounds = array<i64: 8, 2, 32>}, {transform_indices = @transform_1, window_bounds = array<i64: 8, 32>}, {transform_indices = @transform_2, window_bounds = array<i64: 8, 2, 32>}]} {
    %c0 = arith.constant 0 : index
    %c0_0 = arith.constant 0 : index
    %c0_1 = arith.constant 0 : index
    %0 = vector.load %arg1[%c0, %c0_0, %c0_1] : memref<8x2x32xf32, #tpu.memory_space<vmem>>, vector<8x2x32xf32>
    %c0_2 = arith.constant 0 : index
    %c0_3 = arith.constant 0 : index
    %1 = vector.load %arg2[%c0_2, %c0_3] : memref<8x32xf32, #tpu.memory_space<vmem>>, vector<8x32xf32>
    %2 = vector.shape_cast %1 : vector<8x32xf32> to vector<8x1x32xf32>
    %3 = vector.broadcast %2 : vector<8x1x32xf32> to vector<8x2x32xf32>
    %4 = arith.addf %0, %3 : vector<8x2x32xf32>
    %c0_4 = arith.constant 0 : index
    %c0_5 = arith.constant 0 : index
    %c0_6 = arith.constant 0 : index
    %5 = vector.load %arg3[%c0_4, %c0_5, %c0_6] : memref<8x2x32xf32, #tpu.memory_space<vmem>>, vector<8x2x32xf32>
    tpu.vector_store %arg3[%c0_4, %c0_5, %c0_6], %4 {strides = array<i32>} : memref<8x2x32xf32, #tpu.memory_space<vmem>>, vector<8x2x32xf32>,
    return
  }
  func.func @transform_0(%arg0: i32) -> (i32, i32, i32) {
    %c0_i32 = arith.constant 0 : i32
    %c0_i32_0 = arith.constant 0 : i32
    %c0_i32_1 = arith.constant 0 : i32
    return %arg0, %c0_i32, %c0_i32_0 : i32, i32, i32
  }
  func.func @transform_1(%arg0: i32) -> (i32, i32) {
    %c0_i32 = arith.constant 0 : i32
    %c0_i32_0 = arith.constant 0 : i32
    return %arg0, %c0_i32 : i32, i32
  }
  func.func @transform_2(%arg0: i32) -> (i32, i32, i32) {
    %c0_i32 = arith.constant 0 : i32
    %c0_i32_0 = arith.constant 0 : i32
    %c0_i32_1 = arith.constant 0 : i32
    return %arg0, %c0_i32, %c0_i32_0 : i32, i32, i32
  }
}

</mosaic_0001>

<llo_original>
// kernel: tpu_custom_call.1
$region0: #{tpu_custom_call.1}
  #allocation0 [shape = 'u32[]', space=smem, size = 0x4, offset = 0x4, fixed_abs, tag = 'smem constant byte address 0x4 - core index']
  #allocation1 [shape = 'u32[72,128]{1,0:T(1,128)}', space=vmem, size = 0x9000, scoped, tag = 'internal scratch']
  %s0 = inlined_call_operand.vmem [shape: f32[8,2,32], index: 0, kind: input, shape index: {}]
  %s1 = inlined_call_operand.vmem [shape: f32[5000,32], index: 1, kind: input, shape index: {}]
  %s2 = inlined_call_operand.hbm [shape: f32[8,2,32], index: 2, kind: output, shape index: {}]
  %s3 = sld [smem:[#allocation0]]
  $region18: #{tpu_custom_call.1} parent=0
    _
  %s5 = ssub.s32 1, %s3
  %s6 = scalar_select 0, %s5, %s3
  $region1: #{tpu_custom_call.1} parent=0
    #allocation2 [shape = 'u8[8192]{0}', space=vmem, size = 0x2000, scoped, tag = 'output window, operand 0, single buffered']
    #allocation3 [shape = 's32[1]{0}', space=sflag, size = 0x4, scoped, tag = 'scoped memory for tpu_custom_call.1']
    %7 = vsyncpa [#allocation3], 0
    // Predicated region
    $region2: #{tpu_custom_call.1} parent=1 // pred_check
      _
    $region3: #{tpu_custom_call.1} parent=1 // pred_check_branch
      %9 = sbr.rel (0) target = $region5
    $region4: #{tpu_custom_call.1} parent=1 // pred_region
      _
    $region5: #{tpu_custom_call.1} parent=1 // pred_fallthru
      _
    // Predicated region
    $region6: #{tpu_custom_call.1} parent=1 // pred_check
      _
    $region7: #{tpu_custom_call.1} parent=1 // pred_check_branch
      %11 = sbr.rel (0) target = $region9
    $region8: #{tpu_custom_call.1} parent=1 // pred_region
      _
    $region9: #{tpu_custom_call.1} parent=1 // pred_fallthru
      _
    %v12 = vld [vmem:[%s0] sm:$0x3]
    %v13 = vld [vmem:[%s0 + $0x2] sm:$0x3]
    %v14 = vld [vmem:[%s0 + $0x4] sm:$0x3]
    %v15 = vld [vmem:[%s0 + $0x6] sm:$0x3]
    %v16 = vld [vmem:[%s0 + $0x8] sm:$0x3]
    %v17 = vld [vmem:[%s0 + $0xa] sm:$0x3]
    %v18 = vld [vmem:[%s0 + $0xc] sm:$0x3]
    %v19 = vld [vmem:[%s0 + $0xe] sm:$0x3]
    %v20 = vld [vmem:[%s1] sm:$0xff]
    %v22 = vrot.slane %v20, 1
    %v23 = vrot.slane %v20, 2
    %v24 = vrot.slane %v20, 3
    %v25 = vrot.slane %v20, 4
    %v26 = vrot.slane %v20, 5
    %v27 = vrot.slane %v20, 6
    %v28 = vrot.slane %v20, 7
    %v29 = vperm.slane %v20, 0
    %v30 = vperm.slane %v22, 0
    %v31 = vperm.slane %v23, 0
    %v32 = vperm.slane %v24, 0
    %v33 = vperm.slane %v25, 0
    %v34 = vperm.slane %v26, 0
    %v35 = vperm.slane %v27, 0
    %v36 = vperm.slane %v28, 0
    %v45 = vadd.f32 %v12, %v29
    %v46 = vadd.f32 %v13, %v30
    %v47 = vadd.f32 %v14, %v31
    %v48 = vadd.f32 %v15, %v32
    %v49 = vadd.f32 %v16, %v33
    %v50 = vadd.f32 %v17, %v34
    %v51 = vadd.f32 %v18, %v35
    %v52 = vadd.f32 %v19, %v36
    %vm53 = vcmask 254976
    %54 = vst.msk [vmem:[#allocation2] sm:$0x3] %vm53, %v45
    %55 = vst.msk [vmem:[#allocation2 + $0x2] sm:$0x3] %vm53, %v46
    %56 = vst.msk [vmem:[#allocation2 + $0x4] sm:$0x3] %vm53, %v47
    %57 = vst.msk [vmem:[#allocation2 + $0x6] sm:$0x3] %vm53, %v48
    %58 = vst.msk [vmem:[#allocation2 + $0x8] sm:$0x3] %vm53, %v49
    %59 = vst.msk [vmem:[#allocation2 + $0xa] sm:$0x3] %vm53, %v50
    %60 = vst.msk [vmem:[#allocation2 + $0xc] sm:$0x3] %vm53, %v51
    %61 = vst.msk [vmem:[#allocation2 + $0xe] sm:$0x3] %vm53, %v52
    // Predicated region
    $region10: #{tpu_custom_call.1} parent=1 // pred_check
      _
    $region11: #{tpu_custom_call.1} parent=1 // pred_check_branch
      %63 = sbr.rel (0) target = $region13
    $region12: #{tpu_custom_call.1} parent=1 // pred_region
      %65 = vsyncadd [#allocation3], 0
      %s66 = sshll.u32 [#allocation2], 4
      %s67 = int_to_ptr.vmem [resolvable:$true] %s66
      %s68 = sshll.u32 %s2, 4
      %s69 = int_to_ptr.hbm [resolvable:$true] %s68
      %74 = dma.vmem_to_hbm [thread:$0]  %s67, 256, %s69, [#allocation3], 32, 32, 2
    $region13: #{tpu_custom_call.1} parent=1 // pred_fallthru
      _
    // Predicated region
    $region14: #{tpu_custom_call.1} parent=1 // pred_check
      _
    $region15: #{tpu_custom_call.1} parent=1 // pred_check_branch
      %76 = sbr.rel (0) target = $region17
    $region16: #{tpu_custom_call.1} parent=1 // pred_region
      %78 = dma.done [#allocation3], 256
    $region17: #{tpu_custom_call.1} parent=1 // pred_fallthru
      _
    %79 = vsyncpa [#allocation3], 1

</llo_original>
